<compile_context>
chip_gen: v5e
topology: v5e:2x2
jax: 0.10.0
libtpu: 0.0.40
codegen_flags: <defaults>
</compile_context>

<pallas_src>
import functools

import jax
import jax.numpy as jnp
from jax.experimental import pallas as pl
from jax.experimental.pallas import tpu as pltpu


def _round_up(x, m):
    return (x + m - 1) // m * m


def _vmem_capacity_bytes():
    try:
        info = pltpu.get_tpu_info()
        cap = getattr(info, "vmem_capacity_bytes", None)
        if cap:
            return int(cap)
    except Exception:
        pass
    return 64 * 1024 * 1024  # conservative (v7x per-TC)


def _vmem_bytes(bm, bn, bk, itemsize):
    """Double-buffered tiles + f32 accumulators for one grid step."""
    x_tile = 2 * bm * bk * itemsize
    w_tiles = 2 * 2 * bk * bn * itemsize       # w1 + w2
    b_tiles = 2 * 2 * 1 * bn * itemsize
    o_tile = 2 * bm * bn * itemsize
    acc = 2 * bm * bn * 4
    return x_tile + w_tiles + b_tiles + o_tile + acc


def gated_tanh_kernel(x_ref, w1_ref, b1_ref, w2_ref, b2_ref, o_ref,
                      acc1_ref, acc2_ref, *, use_bf16_matmul, approx_gate):
    """One (block_m, block_n) output tile, accumulated over the K grid axis."""
    k = pl.program_id(2)

    @pl.when(k == 0)
    def _init():
        acc1_ref[...] = jnp.zeros_like(acc1_ref)
        acc2_ref[...] = jnp.zeros_like(acc2_ref)

    x = x_ref[...]
    w1 = w1_ref[...]
    w2 = w2_ref[...]
    if use_bf16_matmul:
        x = x.astype(jnp.bfloat16)
        w1 = w1.astype(jnp.bfloat16)
        w2 = w2.astype(jnp.bfloat16)

    # Two MXU dots, f32 accumulation in VMEM scratch.
    acc1_ref[...] += jnp.dot(x, w1, preferred_element_type=jnp.float32)
    acc2_ref[...] += jnp.dot(x, w2, preferred_element_type=jnp.float32)

    @pl.when(k == pl.num_programs(2) - 1)
    def _finalize():
        y1 = acc1_ref[...] + b1_ref[...].astype(jnp.float32)
        y2 = acc2_ref[...] + b2_ref[...].astype(jnp.float32)
        if approx_gate:
            # sigmoid(y2) = 1 / (1 + exp(-y2)); exp + approx reciprocal both run
            # on the EUP slot, trimming VALU work in the small-Din (EUP-bound)
            # regime.
            gate = pl.reciprocal(1.0 + jnp.exp(-y2), approx=True)
        else:
            gate = jax.nn.sigmoid(y2)
        o_ref[...] = (jnp.tanh(y1) * gate).astype(o_ref.dtype)


def gated_tanh(x, w1, b1, w2, b2, *, block_m=None, block_n=None, block_k=None,
               vmem_limit_bytes=None, use_bf16_matmul=False, approx_gate=True):
    """x: [M, Din]; w1/w2: [Din, Dout] (PyTorch weight transposed); b: [Dout].

    Returns tanh(x @ w1 + b1) * sigmoid(x @ w2 + b2), shape [M, Dout].
    Ragged M relies on Pallas masking OOB output rows; do NOT add row-wise
    reductions inside the kernel without revisiting that.
    """
    M, Din = x.shape
    Dout = w1.shape[1]
    itemsize = jnp.dtype(x.dtype).itemsize
    b1 = jnp.reshape(b1, (1, Dout))
    b2 = jnp.reshape(b2, (1, Dout))

    cap = _vmem_capacity_bytes()
    budget = cap // 2  # working-set target, leaves room for compiler scratch

    # ---- tile selection (lane-dense N, K-tiled when Din is large) -----------
    dout128 = _round_up(Dout, 128)
    bn = min(256, dout128) if block_n is None else block_n
    bn = min(max(128, _round_up(bn, 128)), dout128)

    bk = (Din if Din <= 2048 else 2048) if block_k is None else block_k
    bk = min(bk, Din)
    if bk < Din:
        bk = max(128, (bk // 128) * 128)

    bm = 512 if block_m is None else block_m
    bm = min(_round_up(bm, 8), _round_up(M, 8))

    # Shrink until the double-buffered working set fits the VMEM budget.
    for _ in range(32):
        if _vmem_bytes(bm, bn, bk, itemsize) <= budget:
            break
        if bm > 128:
            bm = max(128, _round_up(bm // 2, 8))
            continue
        if (bk < Din) or (Din > 128):
            new_bk = max(128, ((bk // 2) // 128) * 128)
            if new_bk < bk:
                bk = new_bk
                continue
        if bn > 128:
            bn = max(128, ((bn // 2) // 128) * 128)
            continue
        if bm > 8:
            bm = max(8, _round_up(bm // 2, 8))
            continue
        break

    dout_pad = _round_up(Dout, bn)
    n_tiles = dout_pad // bn
    if bk >= Din:
        bk, din_pad = Din, Din
    else:
        din_pad = _round_up(Din, bk)
    k_tiles = din_pad // bk
    m_tiles = pl.cdiv(M, bm)

    # Megacore balance (v7x has 2 TCs): make sure the parallel grid has >1 tile.
    if m_tiles * n_tiles == 1 and M > 8:
        bm_half = _round_up(pl.cdiv(M, 2), 8)
        if bm_half < bm:
            bm = bm_half
            m_tiles = pl.cdiv(M, bm)

    # ---- host-side zero padding (only when ragged).  For production, pad the
    #      weights once at parameter-load time instead of per call. ------------
    xp, w1p, w2p, b1p, b2p = x, w1, w2, b1, b2
    if din_pad != Din:
        xp = jnp.pad(xp, ((0, 0), (0, din_pad - Din)))
        w1p = jnp.pad(w1p, ((0, din_pad - Din), (0, 0)))
        w2p = jnp.pad(w2p, ((0, din_pad - Din), (0, 0)))
    if dout_pad != Dout:
        w1p = jnp.pad(w1p, ((0, 0), (0, dout_pad - Dout)))
        w2p = jnp.pad(w2p, ((0, 0), (0, dout_pad - Dout)))
        b1p = jnp.pad(b1p, ((0, 0), (0, dout_pad - Dout)))
        b2p = jnp.pad(b2p, ((0, 0), (0, dout_pad - Dout)))

    # ---- grid order: put the LARGER operand on the outer parallel axis so it
    #      is not re-streamed across the inner axis when K fits in one tile. ---
    x_bytes = M * Din * itemsize
    w_bytes = 2 * Din * Dout * itemsize
    m_outer = x_bytes >= w_bytes
    if m_outer:
        grid = (m_tiles, n_tiles, k_tiles)
        x_spec = pl.BlockSpec((bm, bk), lambda m, n, k: (m, k))
        w_spec = pl.BlockSpec((bk, bn), lambda m, n, k: (k, n))
        b_spec = pl.BlockSpec((1, bn), lambda m, n, k: (0, n))
        o_spec = pl.BlockSpec((bm, bn), lambda m, n, k: (m, n))
    else:
        grid = (n_tiles, m_tiles, k_tiles)
        x_spec = pl.BlockSpec((bm, bk), lambda n, m, k: (m, k))
        w_spec = pl.BlockSpec((bk, bn), lambda n, m, k: (k, n))
        b_spec = pl.BlockSpec((1, bn), lambda n, m, k: (0, n))
        o_spec = pl.BlockSpec((bm, bn), lambda n, m, k: (m, n))

    if vmem_limit_bytes is None:
        est = _vmem_bytes(bm, bn, bk, itemsize)
        vmem_limit_bytes = int(min(max(2 * est, 32 << 20), int(cap * 0.9)))

    kernel = functools.partial(gated_tanh_kernel,
                               use_bf16_matmul=use_bf16_matmul,
                               approx_gate=approx_gate)

    out = pl.pallas_call(
        kernel,
        out_shape=jax.ShapeDtypeStruct((M, dout_pad), x.dtype),
        grid_spec=pltpu.PrefetchScalarGridSpec(
            num_scalar_prefetch=0,
            grid=grid,
            in_specs=[x_spec, w_spec, b_spec, w_spec, b_spec],
            out_specs=o_spec,
            scratch_shapes=[pltpu.VMEM((bm, bn), jnp.float32),
                            pltpu.VMEM((bm, bn), jnp.float32)],
        ),
        compiler_params=pltpu.CompilerParams(
            dimension_semantics=("parallel", "parallel", "arbitrary"),
            vmem_limit_bytes=int(vmem_limit_bytes),
        ),
    )(xp, w1p, b1p, w2p, b2p)

    if dout_pad != Dout:
        out = out[:, :Dout]
    return out


if __name__ == "__main__":
    def make_params(key, batch, din, dout, dtype=jnp.float32):
        kx, kw1, kb1, kw2, kb2 = jax.random.split(key, 5)
        bound = 1.0 / (din ** 0.5)
        x = jax.random.normal(kx, (batch, din), dtype=dtype)
        # [Din, Dout] layout == PyTorch nn.Linear weight transposed.
        w1 = jax.random.uniform(kw1, (din, dout), dtype, -bound, bound)
        b1 = jax.random.uniform(kb1, (dout,), dtype, -bound, bound)
        w2 = jax.random.uniform(kw2, (din, dout), dtype, -bound, bound)
        b2 = jax.random.uniform(kb2, (dout,), dtype, -bound, bound)
        return x, w1, b1, w2, b2

    def reference(x, w1, b1, w2, b2):
        return jnp.tanh(x @ w1 + b1) * jax.nn.sigmoid(x @ w2 + b2)

    # Case 1: small shapes, ragged Dout (pad-to-128 + slice path), approx gate.
    x, w1, b1, w2, b2 = make_params(jax.random.PRNGKey(0), 16, 32, 48)
    out = gated_tanh(x, w1, b1, w2, b2)
    jax.block_until_ready(out)
    ref = reference(x, w1, b1, w2, b2)
    assert out.shape == ref.shape
    # Approx EUP reciprocal gate -> loose tolerance.
    assert jnp.allclose(out, ref, atol=1e-2, rtol=1e-2), \
        float(jnp.max(jnp.abs(out - ref)))

    # Same shapes with exact sigmoid -> tight tolerance.
    out_exact = gated_tanh(x, w1, b1, w2, b2, approx_gate=False)
    jax.block_until_ready(out_exact)
    assert jnp.allclose(out_exact, ref, atol=1e-4, rtol=1e-4), \
        float(jnp.max(jnp.abs(out_exact - ref)))

    # Case 2: K-tiled path (k_tiles=2) + megacore M split + accumulator init/
    # finalize across the "arbitrary" K axis.
    x, w1, b1, w2, b2 = make_params(jax.random.PRNGKey(1), 64, 256, 128)
    out = gated_tanh(x, w1, b1, w2, b2, block_k=128, approx_gate=False)
    jax.block_until_ready(out)
    ref = reference(x, w1, b1, w2, b2)
    assert out.shape == ref.shape
    assert jnp.allclose(out, ref, atol=1e-4, rtol=1e-4), \
        float(jnp.max(jnp.abs(out - ref)))

    print("KERNEL_OK")
</pallas_src>

<mosaic_0001>
module attributes {stable_mosaic.version = 11 : i64} {
  func.func @gated_tanh_kernel(%arg0: i32, %arg1: i32, %arg2: i32, %arg3: memref<8x32xf32, #tpu.memory_space<vmem>>, %arg4: memref<32x128xf32, #tpu.memory_space<vmem>>, %arg5: memref<1x128xf32, #tpu.memory_space<vmem>>, %arg6: memref<32x128xf32, #tpu.memory_space<vmem>>, %arg7: memref<1x128xf32, #tpu.memory_space<vmem>>, %arg8: memref<8x128xf32, #tpu.memory_space<vmem>>, %arg9: memref<8x128xf32, #tpu.memory_space<vmem>>, %arg10: memref<8x128xf32, #tpu.memory_space<vmem>>) attributes {dimension_semantics = [#tpu.dimension_semantics<parallel>, #tpu.dimension_semantics<parallel>, #tpu.dimension_semantics<arbitrary>], iteration_bounds = array<i64: 1, 2, 1>, scalar_prefetch = 0 : i64, scratch_operands = 2 : i64, tpu.core_type = #tpu.core_type<tc>, window_params = [{transform_indices = @transform_0, window_bounds = array<i64: 8, 32>}, {transform_indices = @transform_1, window_bounds = array<i64: 32, 128>}, {transform_indices = @transform_2, window_bounds = array<i64: 1, 128>}, {transform_indices = @transform_3, window_bounds = array<i64: 32, 128>}, {transform_indices = @transform_4, window_bounds = array<i64: 1, 128>}, {transform_indices = @transform_5, window_bounds = array<i64: 8, 128>}]} {
    %c0_i32 = arith.constant 0 : i32
    %0 = arith.cmpi eq, %arg2, %c0_i32 : i32
    %1 = arith.extui %0 : i1 to i32
    %c0_i32_0 = arith.constant 0 : i32
    %2 = arith.cmpi ne, %1, %c0_i32_0 : i32
    scf.if %2 {
      %cst_17 = arith.constant 0.000000e+00 : f32
      %17 = vector.broadcast %cst_17 : f32 to vector<8x128xf32>
      %c0_18 = arith.constant 0 : index
      %c0_19 = arith.constant 0 : index
      %18 = vector.load %arg9[%c0_18, %c0_19] : memref<8x128xf32, #tpu.memory_space<vmem>>, vector<8x128xf32>
      tpu.vector_store %arg9[%c0_18, %c0_19], %17 {strides = array<i32>} : memref<8x128xf32, #tpu.memory_space<vmem>>, vector<8x128xf32>,
      %cst_20 = arith.constant 0.000000e+00 : f32
      %19 = vector.broadcast %cst_20 : f32 to vector<8x128xf32>
      %c0_21 = arith.constant 0 : index
      %c0_22 = arith.constant 0 : index
      %20 = vector.load %arg10[%c0_21, %c0_22] : memref<8x128xf32, #tpu.memory_space<vmem>>, vector<8x128xf32>
      tpu.vector_store %arg10[%c0_21, %c0_22], %19 {strides = array<i32>} : memref<8x128xf32, #tpu.memory_space<vmem>>, vector<8x128xf32>,
    } else {
    }
    %c0 = arith.constant 0 : index
    %c0_1 = arith.constant 0 : index
    %3 = vector.load %arg3[%c0, %c0_1] : memref<8x32xf32, #tpu.memory_space<vmem>>, vector<8x32xf32>
    %c0_2 = arith.constant 0 : index
    %c0_3 = arith.constant 0 : index
    %4 = vector.load %arg4[%c0_2, %c0_3] : memref<32x128xf32, #tpu.memory_space<vmem>>, vector<32x128xf32>
    %c0_4 = arith.constant 0 : index
    %c0_5 = arith.constant 0 : index
    %5 = vector.load %arg6[%c0_4, %c0_5] : memref<32x128xf32, #tpu.memory_space<vmem>>, vector<32x128xf32>
    %c0_6 = arith.constant 0 : index
    %c0_7 = arith.constant 0 : index
    %6 = vector.load %arg9[%c0_6, %c0_7] : memref<8x128xf32, #tpu.memory_space<vmem>>, vector<8x128xf32>
    %cst = arith.constant dense<0.000000e+00> : vector<8x128xf32>
    %7 = tpu.matmul %3, %4, %cst {dimension_numbers = #tpu.dot_dimension_numbers<[1], [0], [0], [1], [0, 0, 1, 1], [], []>} : vector<8x32xf32>, vector<32x128xf32>, vector<8x128xf32> -> vector<8x128xf32>
    %8 = arith.addf %6, %7 : vector<8x128xf32>
    %c0_8 = arith.constant 0 : index
    %c0_9 = arith.constant 0 : index
    %9 = vector.load %arg9[%c0_8, %c0_9] : memref<8x128xf32, #tpu.memory_space<vmem>>, vector<8x128xf32>
    tpu.vector_store %arg9[%c0_8, %c0_9], %8 {strides = array<i32>} : memref<8x128xf32, #tpu.memory_space<vmem>>, vector<8x128xf32>,
    %c0_10 = arith.constant 0 : index
    %c0_11 = arith.constant 0 : index
    %10 = vector.load %arg10[%c0_10, %c0_11] : memref<8x128xf32, #tpu.memory_space<vmem>>, vector<8x128xf32>
    %cst_12 = arith.constant dense<0.000000e+00> : vector<8x128xf32>
    %11 = tpu.matmul %3, %5, %cst_12 {dimension_numbers = #tpu.dot_dimension_numbers<[1], [0], [0], [1], [0, 0, 1, 1], [], []>} : vector<8x32xf32>, vector<32x128xf32>, vector<8x128xf32> -> vector<8x128xf32>
    %12 = arith.addf %10, %11 : vector<8x128xf32>
    %c0_13 = arith.constant 0 : index
    %c0_14 = arith.constant 0 : index
    %13 = vector.load %arg10[%c0_13, %c0_14] : memref<8x128xf32, #tpu.memory_space<vmem>>, vector<8x128xf32>
    tpu.vector_store %arg10[%c0_13, %c0_14], %12 {strides = array<i32>} : memref<8x128xf32, #tpu.memory_space<vmem>>, vector<8x128xf32>,
    %c0_i32_15 = arith.constant 0 : i32
    %14 = arith.cmpi eq, %arg2, %c0_i32_15 : i32
    %15 = arith.extui %14 : i1 to i32
    %c0_i32_16 = arith.constant 0 : i32
    %16 = arith.cmpi ne, %15, %c0_i32_16 : i32
    scf.if %16 {
      %c0_17 = arith.constant 0 : index
      %c0_18 = arith.constant 0 : index
      %17 = vector.load %arg9[%c0_17, %c0_18] : memref<8x128xf32, #tpu.memory_space<vmem>>, vector<8x128xf32>
      %c0_19 = arith.constant 0 : index
      %c0_20 = arith.constant 0 : index
      %18 = vector.load %arg5[%c0_19, %c0_20] : memref<1x128xf32, #tpu.memory_space<vmem>>, vector<1x128xf32>
      %19 = vector.broadcast %18 : vector<1x128xf32> to vector<8x128xf32>
      %20 = arith.addf %17, %19 : vector<8x128xf32>
      %c0_21 = arith.constant 0 : index
      %c0_22 = arith.constant 0 : index
      %21 = vector.load %arg10[%c0_21, %c0_22] : memref<8x128xf32, #tpu.memory_space<vmem>>, vector<8x128xf32>
      %c0_23 = arith.constant 0 : index
      %c0_24 = arith.constant 0 : index
      %22 = vector.load %arg7[%c0_23, %c0_24] : memref<1x128xf32, #tpu.memory_space<vmem>>, vector<1x128xf32>
      %23 = vector.broadcast %22 : vector<1x128xf32> to vector<8x128xf32>
      %24 = arith.addf %21, %23 : vector<8x128xf32>
      %cst_25 = arith.constant 0.000000e+00 : f32
      %25 = vector.broadcast %cst_25 : f32 to vector<8x128xf32>
      %26 = arith.subf %25, %24 : vector<8x128xf32>
      %27 = math.exp %26 : vector<8x128xf32>
      %cst_26 = arith.constant 1.000000e+00 : f32
      %28 = vector.broadcast %cst_26 : f32 to vector<8x128xf32>
      %29 = arith.addf %28, %27 : vector<8x128xf32>
      %30 = tpu.reciprocal %29 {approx = true} : vector<8x128xf32> -> vector<8x128xf32>
      %31 = math.tanh %20 : vector<8x128xf32>
      %32 = arith.mulf %31, %30 : vector<8x128xf32>
      %c0_27 = arith.constant 0 : index
      %c0_28 = arith.constant 0 : index
      %33 = vector.load %arg8[%c0_27, %c0_28] : memref<8x128xf32, #tpu.memory_space<vmem>>, vector<8x128xf32>
      tpu.vector_store %arg8[%c0_27, %c0_28], %32 {strides = array<i32>} : memref<8x128xf32, #tpu.memory_space<vmem>>, vector<8x128xf32>,
    } else {
    }
    return
  }
  func.func @transform_0(%arg0: i32, %arg1: i32, %arg2: i32) -> (i32, i32) {
    %c0_i32 = arith.constant 0 : i32
    return %arg1, %arg2 : i32, i32
  }
  func.func @transform_1(%arg0: i32, %arg1: i32, %arg2: i32) -> (i32, i32) {
    %c0_i32 = arith.constant 0 : i32
    return %arg2, %arg0 : i32, i32
  }
  func.func @transform_2(%arg0: i32, %arg1: i32, %arg2: i32) -> (i32, i32) {
    %c0_i32 = arith.constant 0 : i32
    %c0_i32_0 = arith.constant 0 : i32
    return %c0_i32, %arg0 : i32, i32
  }
  func.func @transform_3(%arg0: i32, %arg1: i32, %arg2: i32) -> (i32, i32) {
    %c0_i32 = arith.constant 0 : i32
    return %arg2, %arg0 : i32, i32
  }
  func.func @transform_4(%arg0: i32, %arg1: i32, %arg2: i32) -> (i32, i32) {
    %c0_i32 = arith.constant 0 : i32
    %c0_i32_0 = arith.constant 0 : i32
    return %c0_i32, %arg0 : i32, i32
  }
  func.func @transform_5(%arg0: i32, %arg1: i32, %arg2: i32) -> (i32, i32) {
    %c0_i32 = arith.constant 0 : i32
    return %arg1, %arg0 : i32, i32
  }
}

</mosaic_0001>

<llo_original>
// kernel: tpu_custom_call.1
$region0: #{tpu_custom_call.1}
  #allocation0 [shape = 'u32[]', space=smem, size = 0x4, offset = 0x4, fixed_abs, tag = 'smem constant byte address 0x4 - core index']
  #allocation1 [shape = 'u32[72,128]{1,0:T(1,128)}', space=vmem, size = 0x9000, scoped, tag = 'internal scratch']
  #allocation2 [shape = 'f32[8,128]{1,0:T(8,128)}', space=vmem, size = 0x1000, scoped, tag = 'scratch operand']
  #allocation3 [shape = 'f32[8,128]{1,0:T(8,128)}', space=vmem, size = 0x1000, scoped, tag = 'scratch operand']
  %s0 = inlined_call_operand.hbm [shape: f32[16,32], index: 0, kind: input, shape index: {}]
  %s1 = inlined_call_operand.hbm [shape: f32[32,128], index: 1, kind: input, shape index: {}]
  %s2 = inlined_call_operand.vmem [shape: f32[1,128], index: 2, kind: input, shape index: {}]
  %s3 = inlined_call_operand.hbm [shape: f32[32,128], index: 3, kind: input, shape index: {}]
  %s4 = inlined_call_operand.vmem [shape: f32[1,128], index: 4, kind: input, shape index: {}]
  %s5 = inlined_call_operand.hbm [shape: f32[16,128], index: 5, kind: output, shape index: {}]
  %s6 = sld [smem:[#allocation0]]
  $region73: #{tpu_custom_call.1} parent=0
    _
  %s8 = ssub.s32 1, %s6
  %s9 = scalar_select 0, %s8, %s6
  $region1: #{tpu_custom_call.1} parent=0
    #allocation4 [shape = 'u8[8192]{0}', space=vmem, size = 0x2000, scoped, tag = 'input window, operand 0']
    #allocation5 [shape = 's32[2]{0}', space=sflag, size = 0x8, scoped, tag = 'scoped memory for tpu_custom_call.1']
    #allocation6 [shape = 's32[2]{0}', space=sflag, size = 0x8, scoped, tag = 'scoped memory for tpu_custom_call.1']
    #allocation7 [shape = 'u8[16384]{0}', space=vmem, size = 0x4000, scoped, tag = 'input window, operand 1, single buffered']
    #allocation8 [shape = 's32[1]{0}', space=sflag, size = 0x4, scoped, tag = 'scoped memory for tpu_custom_call.1']
    #allocation9 [shape = 'u8[16384]{0}', space=vmem, size = 0x4000, scoped, tag = 'input window, operand 3, single buffered']
    #allocation10 [shape = 'u8[8192]{0}', space=vmem, size = 0x2000, scoped, tag = 'output window, operand 0']
    %10 = vsyncpa [#allocation5], 0
    %s11 = scalar_lea.sflag [#allocation5], 1
    %12 = vsyncpa %s11, 0
    %13 = vsyncpa [#allocation8], 0
    %14 = vsyncpa [#allocation6], 0
    %s15 = scalar_lea.sflag [#allocation6], 1
    %16 = vsyncpa %s15, 0
    loop: start=0, step=1, limit=4
    $region2: #{tpu_custom_call.1} parent=1 // loop_pre_header
      _
    $region3: #{tpu_custom_call.1} parent=1 // loop_header
      %s18 = sphi 0, %s22
      %p19 = scmp.ge.s32.totalorder %s18, 4
      %s25 = sphi 0, %s44
      %s26 = sphi 0, %s40
      %s27 = sphi 0, %s36
      %s28 = sphi 0, %s25
      %s29 = sphi 0, %s26
      %s30 = sphi 0, %s27
      %s31 = sphi 0, %s28
      %s32 = sphi 0, %s29
      %s33 = sphi 0, %s30
      %s49 = sphi 0, %s51
      %s52 = sphi 0, %s49
      %s53 = sphi 0, %s52
      %s69 = sphi 0, %s53
      %s77 = sphi 0, %s79
      %s80 = sphi 0, %s77
      %s81 = sphi 0, %s80
      %s97 = sphi 0, %s81
      %s103 = sphi 0, %s105
      %s106 = sphi 0, %s103
      %s107 = sphi 0, %s106
      %s123 = sphi 0, %s107
      %s131 = sphi 0, %s133
      %s134 = sphi 0, %s131
      %s135 = sphi 0, %s134
      %s151 = sphi 0, %s135
      %s157 = sphi 0, %s159
      %s160 = sphi 0, %s157
      %s161 = sphi 0, %s160
      %s177 = sphi 0, %s161
      %s185 = sphi 0, %s187
      %s188 = sphi 0, %s185
      %s189 = sphi 0, %s188
      %s205 = sphi 0, %s189
    $region4: #{tpu_custom_call.1} parent=1 // loop_header_branch
      %21 = sbr.rel (%p19) target = $region8
    $region5: #{tpu_custom_call.1} parent=1 // loop_body
      %s23 = ssub.s32 %s18, 1
      %s24 = ssub.s32 %s18, 2
      %s34 = sadd.s32 1, %s27
      %p35 = scmp.ge.s32.totalorder %s34, 1
      %s36 = scalar_select %p35, 0, %s34
      %s37 = sadd.s32 1, %s26
      %s38 = scalar_select %p35, %s37, %s26
      %p39 = scmp.ge.s32.totalorder %s38, 2
      %s40 = scalar_select %p39, 0, %s38
      %s41 = sadd.s32 1, %s25
      %s42 = scalar_select %p39, %s41, %s25
      %p43 = scmp.ge.s32.totalorder %s42, 1
      %s44 = scalar_select %p43, 0, %s42
      %s45 = ssub.s32 %s26, %s40
      %s46 = ssub.s32 %s27, %s36
      %s47 = sor.u32 %s45, %s46
      %p48 = scmp.eq.s32.totalorder %s47, 0
      %s50 = sadd.s32 %s49, 1
      %s51 = scalar_select %p48, %s49, %s50
      %p54 = pneg %p48
      %p55 = scmp.eq.s32.totalorder %s18, 1
      %p56 = por %p54, %p55
      %p57 = scmp.ne.s32.totalorder %s49, %s52
      %p58 = scmp.eq.s32.totalorder %s18, 0
      %p59 = por %p57, %p58
      %p60 = scmp.ne.s32.totalorder %s49, %s52
      %p61 = scmp.eq.s32.totalorder %s23, 1
      %p62 = por %p60, %p61
      %p63 = scmp.ne.s32.totalorder %s52, %s53
      %p64 = scmp.eq.s32.totalorder %s23, 0
      %p65 = por %p63, %p64
      %p66 = scmp.ne.s32.totalorder %s52, %s53
      %p67 = scmp.eq.s32.totalorder %s24, 1
      %p68 = por %p66, %p67
      %p70 = scmp.ne.s32.totalorder %s53, %s69
      %p71 = scmp.eq.s32.totalorder %s24, 0
      %p72 = por %p70, %p71
      %s73 = ssub.s32 %s27, %s36
      %s74 = ssub.s32 %s25, %s44
      %s75 = sor.u32 %s73, %s74
      %p76 = scmp.eq.s32.totalorder %s75, 0
      %s78 = sadd.s32 %s77, 1
      %s79 = scalar_select %p76, %s77, %s78
      %p82 = pneg %p76
      %p83 = scmp.eq.s32.totalorder %s18, 1
      %p84 = por %p82, %p83
      %p85 = scmp.ne.s32.totalorder %s77, %s80
      %p86 = scmp.eq.s32.totalorder %s18, 0
      %p87 = por %p85, %p86
      %p88 = scmp.ne.s32.totalorder %s77, %s80
      %p89 = scmp.eq.s32.totalorder %s23, 1
      %p90 = por %p88, %p89
      %p91 = scmp.ne.s32.totalorder %s80, %s81
      %p92 = scmp.eq.s32.totalorder %s23, 0
      %p93 = por %p91, %p92
      %p94 = scmp.ne.s32.totalorder %s80, %s81
      %p95 = scmp.eq.s32.totalorder %s24, 1
      %p96 = por %p94, %p95
      %p98 = scmp.ne.s32.totalorder %s81, %s97
      %p99 = scmp.eq.s32.totalorder %s24, 0
      %p100 = por %p98, %p99
      %s101 = ssub.s32 %s25, %s44
      %p102 = scmp.eq.s32.totalorder %s101, 0
      %s104 = sadd.s32 %s103, 1
      %s105 = scalar_select %p102, %s103, %s104
      %p108 = pneg %p102
      %p109 = scmp.eq.s32.totalorder %s18, 1
      %p110 = por %p108, %p109
      %p111 = scmp.ne.s32.totalorder %s103, %s106
      %p112 = scmp.eq.s32.totalorder %s18, 0
      %p113 = por %p111, %p112
      %p114 = scmp.ne.s32.totalorder %s103, %s106
      %p115 = scmp.eq.s32.totalorder %s23, 1
      %p116 = por %p114, %p115
      %p117 = scmp.ne.s32.totalorder %s106, %s107
      %p118 = scmp.eq.s32.totalorder %s23, 0
      %p119 = por %p117, %p118
      %p120 = scmp.ne.s32.totalorder %s106, %s107
      %p121 = scmp.eq.s32.totalorder %s24, 1
      %p122 = por %p120, %p121
      %p124 = scmp.ne.s32.totalorder %s107, %s123
      %p125 = scmp.eq.s32.totalorder %s24, 0
      %p126 = por %p124, %p125
      %s127 = ssub.s32 %s27, %s36
      %s128 = ssub.s32 %s25, %s44
      %s129 = sor.u32 %s127, %s128
      %p130 = scmp.eq.s32.totalorder %s129, 0
      %s132 = sadd.s32 %s131, 1
      %s133 = scalar_select %p130, %s131, %s132
      %p136 = pneg %p130
      %p137 = scmp.eq.s32.totalorder %s18, 1
      %p138 = por %p136, %p137
      %p139 = scmp.ne.s32.totalorder %s131, %s134
      %p140 = scmp.eq.s32.totalorder %s18, 0
      %p141 = por %p139, %p140
      %p142 = scmp.ne.s32.totalorder %s131, %s134
      %p143 = scmp.eq.s32.totalorder %s23, 1
      %p144 = por %p142, %p143
      %p145 = scmp.ne.s32.totalorder %s134, %s135
      %p146 = scmp.eq.s32.totalorder %s23, 0
      %p147 = por %p145, %p146
      %p148 = scmp.ne.s32.totalorder %s134, %s135
      %p149 = scmp.eq.s32.totalorder %s24, 1
      %p150 = por %p148, %p149
      %p152 = scmp.ne.s32.totalorder %s135, %s151
      %p153 = scmp.eq.s32.totalorder %s24, 0
      %p154 = por %p152, %p153
      %s155 = ssub.s32 %s25, %s44
      %p156 = scmp.eq.s32.totalorder %s155, 0
      %s158 = sadd.s32 %s157, 1
      %s159 = scalar_select %p156, %s157, %s158
      %p162 = pneg %p156
      %p163 = scmp.eq.s32.totalorder %s18, 1
      %p164 = por %p162, %p163
      %p165 = scmp.ne.s32.totalorder %s157, %s160
      %p166 = scmp.eq.s32.totalorder %s18, 0
      %p167 = por %p165, %p166
      %p168 = scmp.ne.s32.totalorder %s157, %s160
      %p169 = scmp.eq.s32.totalorder %s23, 1
      %p170 = por %p168, %p169
      %p171 = scmp.ne.s32.totalorder %s160, %s161
      %p172 = scmp.eq.s32.totalorder %s23, 0
      %p173 = por %p171, %p172
      %p174 = scmp.ne.s32.totalorder %s160, %s161
      %p175 = scmp.eq.s32.totalorder %s24, 1
      %p176 = por %p174, %p175
      %p178 = scmp.ne.s32.totalorder %s161, %s177
      %p179 = scmp.eq.s32.totalorder %s24, 0
      %p180 = por %p178, %p179
      %s181 = ssub.s32 %s26, %s40
      %s182 = ssub.s32 %s25, %s44
      %s183 = sor.u32 %s181, %s182
      %p184 = scmp.eq.s32.totalorder %s183, 0
      %s186 = sadd.s32 %s185, 1
      %s187 = scalar_select %p184, %s185, %s186
      %p190 = pneg %p184
      %p191 = scmp.eq.s32.totalorder %s18, 1
      %p192 = por %p190, %p191
      %p193 = scmp.ne.s32.totalorder %s185, %s188
      %p194 = scmp.eq.s32.totalorder %s18, 0
      %p195 = por %p193, %p194
      %p196 = scmp.ne.s32.totalorder %s185, %s188
      %p197 = scmp.eq.s32.totalorder %s23, 1
      %p198 = por %p196, %p197
      %p199 = scmp.ne.s32.totalorder %s188, %s189
      %p200 = scmp.eq.s32.totalorder %s23, 0
      %p201 = por %p199, %p200
      %p202 = scmp.ne.s32.totalorder %s188, %s189
      %p203 = scmp.eq.s32.totalorder %s24, 1
      %p204 = por %p202, %p203
      %p206 = scmp.ne.s32.totalorder %s189, %s205
      %p207 = scmp.eq.s32.totalorder %s24, 0
      %p208 = por %p206, %p207
      %p209 = scmp.le.s32.totalorder 1, %s18
      %p210 = scmp.lt.s32.totalorder %s18, 3
      %p211 = pnand %p209, %p210
      %p212 = pneg %p211
      // Predicated region
      $region9: #{tpu_custom_call.1} parent=5 // pred_check
        _
      $region10: #{tpu_custom_call.1} parent=5 // pred_check_branch
        %214 = sbr.rel (%p211) target = $region12
      $region11: #{tpu_custom_call.1} parent=5 // pred_region
        %s215 = ssub.s32 %s18, 1
        // Predicated region
        $region13: #{tpu_custom_call.1} parent=11 // pred_check
          %p216 = pneg %p93
        $region14: #{tpu_custom_call.1} parent=11 // pred_check_branch
          %218 = sbr.rel (%p216) target = $region16
        $region15: #{tpu_custom_call.1} parent=11 // pred_region
          %s219 = smul.u32 4, %s30
          %221 = vsyncadd [#allocation8], 0
          %s222 = sadd.s32 %s28, %s219
          %s223 = smul.addr %s222, 8
          %s224 = scalar_lea.hbm %s1, %s223
          %s225 = sshll.u32 %s224, 4
          %s226 = int_to_ptr.hbm [resolvable:$true] %s225
          %s227 = sshll.u32 [#allocation7], 4
          %s228 = int_to_ptr.vmem [resolvable:$true] %s227
          %233 = dma.hbm_to_vmem [thread:$0]  %s226, 512, %s228, [#allocation8], 128, 128, 8
        $region16: #{tpu_custom_call.1} parent=11 // pred_fallthru
          _
        // Predicated region
        $region17: #{tpu_custom_call.1} parent=11 // pred_check
          %p234 = pneg %p119
        $region18: #{tpu_custom_call.1} parent=11 // pred_check_branch
          %236 = sbr.rel (%p234) target = $region20
        $region19: #{tpu_custom_call.1} parent=11 // pred_region
          %p237 = scmp.lt.s32.totalorder %s28, 0
          %s238 = scalar_select %p237, %s28, 0
          %s239 = scalar_lea.vmem %s2, %s238
        $region20: #{tpu_custom_call.1} parent=11 // pred_fallthru
          _
        // Predicated region
        $region21: #{tpu_custom_call.1} parent=11 // pred_check
          %p240 = pneg %p147
        $region22: #{tpu_custom_call.1} parent=11 // pred_check_branch
          %242 = sbr.rel (%p240) target = $region24
        $region23: #{tpu_custom_call.1} parent=11 // pred_region
          %s243 = smul.u32 4, %s30
          %245 = vsyncadd [#allocation8], 0
          %s246 = sadd.s32 %s28, %s243
          %s247 = smul.addr %s246, 8
          %s248 = scalar_lea.hbm %s3, %s247
          %s249 = sshll.u32 %s248, 4
          %s250 = int_to_ptr.hbm [resolvable:$true] %s249
          %s251 = sshll.u32 [#allocation9], 4
          %s252 = int_to_ptr.vmem [resolvable:$true] %s251
          %257 = dma.hbm_to_vmem [thread:$0]  %s250, 512, %s252, [#allocation8], 128, 128, 8
        $region24: #{tpu_custom_call.1} parent=11 // pred_fallthru
          _
        // Predicated region
        $region25: #{tpu_custom_call.1} parent=11 // pred_check
          %p258 = pneg %p173
        $region26: #{tpu_custom_call.1} parent=11 // pred_check_branch
          %260 = sbr.rel (%p258) target = $region28
        $region27: #{tpu_custom_call.1} parent=11 // pred_region
          %p261 = scmp.lt.s32.totalorder %s28, 0
          %s262 = scalar_select %p261, %s28, 0
          %s263 = scalar_lea.vmem %s4, %s262
        $region28: #{tpu_custom_call.1} parent=11 // pred_fallthru
          _
      $region12: #{tpu_custom_call.1} parent=5 // pred_fallthru
        _
      %p264 = scmp.lt.s32.totalorder %s18, 2
      // Predicated region
      $region29: #{tpu_custom_call.1} parent=5 // pred_check
        %p265 = pneg %p264
      $region30: #{tpu_custom_call.1} parent=5 // pred_check_branch
        %267 = sbr.rel (%p265) target = $region32
      $region31: #{tpu_custom_call.1} parent=5 // pred_region
        // Predicated region
        $region33: #{tpu_custom_call.1} parent=31 // pred_check
          %p268 = pneg %p59
        $region34: #{tpu_custom_call.1} parent=31 // pred_check_branch
          %270 = sbr.rel (%p268) target = $region36
        $region35: #{tpu_custom_call.1} parent=31 // pred_region
          %s271 = sand.u32 %s49, 1
          %s272 = scalar_lea.sflag [#allocation5], %s271
          %s273 = sand.u32 %s49, 1
          %s274 = smul.addr %s273, 8
          %s275 = scalar_lea.vmem [#allocation4], %s274
          %277 = vsyncadd %s272, 0
          %s278 = sadd.s32 %s27, %s26
          %s279 = smul.addr %s278, 8
          %s280 = scalar_lea.hbm %s0, %s279
          %s282 = sshll.u32 %s280, 4
          %s283 = int_to_ptr.hbm [resolvable:$true] %s282
          %s284 = sshll.u32 %s275, 4
          %s285 = int_to_ptr.vmem [resolvable:$true] %s284
          %287 = dma.hbm_to_vmem [thread:$0]  %s283, 128, %s285, %s272
        $region36: #{tpu_custom_call.1} parent=31 // pred_fallthru
          _
      $region32: #{tpu_custom_call.1} parent=5 // pred_fallthru
        _
      %p288 = scmp.le.s32.totalorder 1, %s18
      %p289 = scmp.lt.s32.totalorder %s18, 3
      %p290 = pnand %p288, %p289
      %p291 = pneg %p290
      // Predicated region
      $region37: #{tpu_custom_call.1} parent=5 // pred_check
        _
      $region38: #{tpu_custom_call.1} parent=5 // pred_check_branch
        %293 = sbr.rel (%p290) target = $region40
      $region39: #{tpu_custom_call.1} parent=5 // pred_region
        %s294 = ssub.s32 %s18, 1
        %s295 = sand.u32 %s52, 1
        %s296 = scalar_lea.sflag [#allocation5], %s295
        %s297 = sand.u32 %s52, 1
        %s298 = smul.addr %s297, 8
        %s299 = scalar_lea.vmem [#allocation4], %s298
        // Predicated region
        $region41: #{tpu_custom_call.1} parent=39 // pred_check
          %p300 = pneg %p65
        $region42: #{tpu_custom_call.1} parent=39 // pred_check_branch
          %302 = sbr.rel (%p300) target = $region44
        $region43: #{tpu_custom_call.1} parent=39 // pred_region
          %304 = dma.done %s296, 128
        $region44: #{tpu_custom_call.1} parent=39 // pred_fallthru
          _
        // Predicated region
        $region45: #{tpu_custom_call.1} parent=39 // pred_check
          %p305 = pneg %p93
        $region46: #{tpu_custom_call.1} parent=39 // pred_check_branch
          %307 = sbr.rel (%p305) target = $region48
        $region47: #{tpu_custom_call.1} parent=39 // pred_region
          %309 = dma.done [#allocation8], 512
        $region48: #{tpu_custom_call.1} parent=39 // pred_fallthru
          _
        // Predicated region
        $region49: #{tpu_custom_call.1} parent=39 // pred_check
          %p310 = pneg %p147
        $region50: #{tpu_custom_call.1} parent=39 // pred_check_branch
          %312 = sbr.rel (%p310) target = $region52
        $region51: #{tpu_custom_call.1} parent=39 // pred_region
          %314 = dma.done [#allocation8], 512
        $region52: #{tpu_custom_call.1} parent=39 // pred_fallthru
          _
        %s315 = sand.u32 %s52, 1
        %s316 = scalar_lea.sflag [#allocation5], %s315
        %s317 = sand.u32 %s52, 1
        %s318 = smul.addr %s317, 8
        %s319 = scalar_lea.vmem [#allocation4], %s318
        %p320 = pneg %p65
        %p321 = pneg %p62
        %p322 = pneg %p93
        %p323 = pneg %p90
        %p324 = scmp.lt.s32.totalorder %s28, 0
        %s325 = scalar_select %p324, %s28, 0
        %s326 = scalar_lea.vmem %s2, %s325
        %p327 = pneg %p119
        %p328 = pneg %p116
        %p329 = pneg %p147
        %p330 = pneg %p144
        %p331 = scmp.lt.s32.totalorder %s28, 0
        %s332 = scalar_select %p331, %s28, 0
        %s333 = scalar_lea.vmem %s4, %s332
        %p334 = pneg %p173
        %p335 = pneg %p170
        %p336 = pneg %p201
        %p337 = pneg %p198
        %s338 = sand.u32 %s188, 1
        %s339 = scalar_lea.sflag [#allocation6], %s338
        %s340 = sand.u32 %s188, 1
        %s341 = smul.addr %s340, 8
        %s342 = scalar_lea.vmem [#allocation10], %s341
        %s343 = smul.u32 4, %s30
        %p344 = scmp.lt.s32.totalorder %s28, 0
        %s345 = scalar_select %p344, %s28, 0
        %s346 = scalar_lea.vmem %s2, %s345
        %s347 = smul.u32 4, %s30
        %p348 = scmp.lt.s32.totalorder %s28, 0
        %s349 = scalar_select %p348, %s28, 0
        %s350 = scalar_lea.vmem %s4, %s349
        %p351 = scmp.eq.s32.totalorder %s30, 0
        // Predicated region
        $region53: #{tpu_custom_call.1} parent=39 // pred_check
          %p352 = pneg %p351
        $region54: #{tpu_custom_call.1} parent=39 // pred_check_branch
          %354 = sbr.rel (%p352) target = $region56
        $region55: #{tpu_custom_call.1} parent=39 // pred_region
          %355 = vst [vmem:[#allocation2] sm:$0xff] 0.0
          %356 = vst [vmem:[#allocation3] sm:$0xff] 0.0
        $region56: #{tpu_custom_call.1} parent=39 // pred_fallthru
          _
        %v357 = vld [vmem:[%s299] sm:$0xff]
        %v358 = vld [vmem:[#allocation7] sm:$0xff]
        %v359 = vld [vmem:[#allocation7 + $0x8] sm:$0xff]
        %v360 = vld [vmem:[#allocation7 + $0x10] sm:$0xff]
        %v361 = vld [vmem:[#allocation7 + $0x18] sm:$0xff]
        %v362 = vld [vmem:[#allocation9] sm:$0xff]
        %v363 = vld [vmem:[#allocation9 + $0x8] sm:$0xff]
        %v364 = vld [vmem:[#allocation9 + $0x10] sm:$0xff]
        %v365 = vld [vmem:[#allocation9 + $0x18] sm:$0xff]
        %v366 = vld [vmem:[#allocation2] sm:$0xff]
        %vm367 = vcmask 261120
        %v369 = vsel %vm367, %v357, 0
        %371 = vmatpush.msra.mxu0 0.0
        %372 = vmatpush.msra.mxu0 0.0
        %373 = vmatpush.msra.mxu0 0.0
        %374 = vmatpush.msra.mxu0 0.0
        %375 = vmatpush.msra.mxu0 0.0
        %376 = vmatpush.msra.mxu0 0.0
        %377 = vmatpush.msra.mxu0 0.0
        %378 = vmatpush.msra.mxu0 0.0
        %379 = vmatpush.msra.mxu0 0.0
        %380 = vmatpush.msra.mxu0 0.0
        %381 = vmatpush.msra.mxu0 0.0
        %382 = vmatpush.msra.mxu0 0.0
        %383 = vmatpush.msra.mxu0 %v361
        %384 = vmatpush.msra.mxu0 %v360
        %385 = vmatpush.msra.mxu0 %v359
        %386 = vmatpush.msra.mxu0 %v358
        %387 = vmatmul.f32.gmra.mxu0 %v369
        %v388 = vpop.f32.mrf.mxu0
        %v389 = vadd.f32 0.0, %v388
        %390 = vdwg.mxu0
        %v391 = vadd.f32 %v366, %v389
        %392 = vst [vmem:[#allocation2] sm:$0xff] %v391
        %v393 = vld [vmem:[#allocation3] sm:$0xff]
        %394 = vmatpush.msra.mxu0 0.0
        %395 = vmatpush.msra.mxu0 0.0
        %396 = vmatpush.msra.mxu0 0.0
        %397 = vmatpush.msra.mxu0 0.0
        %398 = vmatpush.msra.mxu0 0.0
        %399 = vmatpush.msra.mxu0 0.0
        %400 = vmatpush.msra.mxu0 0.0
        %401 = vmatpush.msra.mxu0 0.0
        %402 = vmatpush.msra.mxu0 0.0
        %403 = vmatpush.msra.mxu0 0.0
        %404 = vmatpush.msra.mxu0 0.0
        %405 = vmatpush.msra.mxu0 0.0
        %406 = vmatpush.msra.mxu0 %v365
        %407 = vmatpush.msra.mxu0 %v364
        %408 = vmatpush.msra.mxu0 %v363
        %409 = vmatpush.msra.mxu0 %v362
        %410 = vmatmul.f32.gmra.mxu0 %v369
        %v411 = vpop.f32.mrf.mxu0
        %v412 = vadd.f32 0.0, %v411
        %413 = vdwg.mxu0
        %v414 = vadd.f32 %v393, %v412
        %415 = vst [vmem:[#allocation3] sm:$0xff] %v414
        // Predicated region
        $region57: #{tpu_custom_call.1} parent=39 // pred_check
          %p416 = pneg %p351
        $region58: #{tpu_custom_call.1} parent=39 // pred_check_branch
          %418 = sbr.rel (%p416) target = $region60
        $region59: #{tpu_custom_call.1} parent=39 // pred_region
          %v419 = vld [vmem:[#allocation2] sm:$0xff]
          %v420 = vld [vmem:[%s346] sm:$0x1]
          %v422 = vperm.slane %v420, 0
          %v424 = vadd.f32 %v419, %v422
          %v425 = vld [vmem:[#allocation3] sm:$0xff]
          %v426 = vld [vmem:[%s350] sm:$0x1]
          %v428 = vperm.slane %v426, 0
          %v430 = vadd.f32 %v425, %v428
          %v431 = vsub.f32 0.0, %v430
          %v432 = vmul.f32 %v431, 1.442695
          %v433 = vpow.pop %v432
          %v434 = vadd.f32 %v433, 1.0
          %v435 = vrcp.pop %v434
          %v436 = vtanh.pop %v424
          %v437 = vmul.f32 %v436, %v435
          %438 = vst [vmem:[%s342] sm:$0xff] %v437
        $region60: #{tpu_custom_call.1} parent=39 // pred_fallthru
          _
        %s439 = sand.u32 %s188, 1
        %s440 = scalar_lea.sflag [#allocation6], %s439
        %s441 = sand.u32 %s188, 1
        %s442 = smul.addr %s441, 8
        %s443 = scalar_lea.vmem [#allocation10], %s442
        // Predicated region
        $region61: #{tpu_custom_call.1} parent=39 // pred_check
          %p444 = pneg %p198
        $region62: #{tpu_custom_call.1} parent=39 // pred_check_branch
          %446 = sbr.rel (%p444) target = $region64
        $region63: #{tpu_custom_call.1} parent=39 // pred_region
          %448 = vsyncadd %s440, 0
          %s449 = sadd.s32 %s28, %s29
          %s450 = smul.addr %s449, 8
          %s451 = scalar_lea.hbm %s5, %s450
          %s453 = sshll.u32 %s443, 4
          %s454 = int_to_ptr.vmem [resolvable:$true] %s453
          %s455 = sshll.u32 %s451, 4
          %s456 = int_to_ptr.hbm [resolvable:$true] %s455
          %458 = dma.vmem_to_hbm [thread:$0]  %s454, 128, %s456, %s440
        $region64: #{tpu_custom_call.1} parent=39 // pred_fallthru
          _
      $region40: #{tpu_custom_call.1} parent=5 // pred_fallthru
        _
      %p459 = scmp.le.s32.totalorder 2, %s18
      // Predicated region
      $region65: #{tpu_custom_call.1} parent=5 // pred_check
        %p460 = pneg %p459
      $region66: #{tpu_custom_call.1} parent=5 // pred_check_branch
        %462 = sbr.rel (%p460) target = $region68
      $region67: #{tpu_custom_call.1} parent=5 // pred_region
        %s463 = ssub.s32 %s18, 2
        // Predicated region
        $region69: #{tpu_custom_call.1} parent=67 // pred_check
          %p464 = pneg %p204
        $region70: #{tpu_custom_call.1} parent=67 // pred_check_branch
          %466 = sbr.rel (%p464) target = $region72
        $region71: #{tpu_custom_call.1} parent=67 // pred_region
          %s467 = sand.u32 %s189, 1
          %s468 = scalar_lea.sflag [#allocation6], %s467
          %s469 = sand.u32 %s189, 1
          %s470 = smul.addr %s469, 8
          %s471 = scalar_lea.vmem [#allocation10], %s470
          %473 = dma.done %s468, 128
        $region72: #{tpu_custom_call.1} parent=67 // pred_fallthru
          _
      $region68: #{tpu_custom_call.1} parent=5 // pred_fallthru
        _
    $region6: #{tpu_custom_call.1} parent=1 // loop_footer
      %s22 = sadd.s32 1, %s18
    $region7: #{tpu_custom_call.1} parent=1 // loop_footer_branch
      %17 = sbr.rel target = $region3
    $region8: #{tpu_custom_call.1} parent=1 // loop_exit
      _
    %474 = vsyncpa [#allocation5], 1
    %s475 = scalar_lea.sflag [#allocation5], 1
    %476 = vsyncpa %s475, 1
    %477 = vsyncpa [#allocation8], 1
    %478 = vsyncpa [#allocation6], 1
    %s479 = scalar_lea.sflag [#allocation6], 1
    %480 = vsyncpa %s479, 1

</llo_original>
